<compile_context>
chip_gen: v7x
topology: tpu7x:2x2x1
jax: 0.10.0
libtpu: 0.0.40
codegen_flags: <defaults>
</compile_context>

<pallas_src>
import functools

import jax
import jax.numpy as jnp
from jax.experimental import pallas as pl
from jax.experimental.pallas import tpu as pltpu

SUBLANE = 8  # vreg sublane width (second-to-last dim)


def _round_up(n, m):
    return ((n + m - 1) // m) * m


def _mlp_kernel(x_ref, w1_ref, b1_ref, w2_ref, b2_ref, o_ref):
    # hidden = relu(x @ W1 + b1): cast to bf16 in VMEM right before the MXU
    # (free filler under the DMA), accumulate in f32, bias/ReLU in f32.
    x = x_ref[...].astype(jnp.bfloat16)
    w1 = w1_ref[...].astype(jnp.bfloat16)
    h = jnp.dot(x, w1, preferred_element_type=jnp.float32)
    h = jnp.maximum(h + b1_ref[...], 0.0)
    # out = hidden @ W2 + b2: downcast hidden only at the second dot.
    w2 = w2_ref[...].astype(jnp.bfloat16)
    y = jnp.dot(h.astype(jnp.bfloat16), w2, preferred_element_type=jnp.float32)
    o_ref[...] = (y + b2_ref[...]).astype(o_ref.dtype)


def _batch_axis_semantics(num_steps):
    """CORE_PARALLEL only on v7x (2 TCs/chip) with >=2 grid steps; plain
    'parallel' everywhere else (known-safe, measured equivalent to
    'arbitrary' on single-TC chips)."""
    kind = ""
    try:
        kind = jax.devices()[0].device_kind.lower()
    except Exception:
        pass
    if num_steps >= 2 and "v7" in kind:
        return (pltpu.CORE_PARALLEL,)
    return ("parallel",)


@functools.partial(jax.jit, static_argnames=("block_b",))
def mlp_forward(x, w1, b1, w2, b2, *, block_b=2048):
    """Forward pass of Net.

    x:  [B, In]     w1: [In, H]   b1: [H] or [1, H]
    w2: [H, Out]    b2: [Out] or [1, Out]
    Returns [B, Out] in float32.
    """
    B, in_size = x.shape
    hidden = w1.shape[1]
    out_size = w2.shape[1]
    b1 = b1.reshape(1, -1).astype(jnp.float32)
    b2 = b2.reshape(1, -1).astype(jnp.float32)

    # Batch tile: multiple of the sublane width, capped at block_b rows.
    tb = min(_round_up(block_b, SUBLANE), _round_up(B, SUBLANE))
    num_steps = pl.cdiv(B, tb)  # ragged last block allowed (writes masked)

    vmem = pltpu.MemorySpace.VMEM

    cost = pl.CostEstimate(
        flops=2 * B * (in_size * hidden + hidden * out_size),
        transcendentals=0,
        bytes_accessed=(x.size * x.dtype.itemsize
                        + w1.size * w1.dtype.itemsize
                        + b1.size * b1.dtype.itemsize
                        + w2.size * w2.dtype.itemsize
                        + b2.size * b2.dtype.itemsize
                        + B * out_size * 4),
    )

    out = pl.pallas_call(
        _mlp_kernel,
        out_shape=jax.ShapeDtypeStruct((B, out_size), jnp.float32),
        grid=(num_steps,),
        in_specs=[
            # x: tiled over the batch grid axis, full (unpadded) feature dim.
            pl.BlockSpec((tb, in_size), lambda i: (i, 0), memory_space=vmem),
            # Weights / biases: full arrays, resident across all grid steps.
            pl.BlockSpec((in_size, hidden), lambda i: (0, 0), memory_space=vmem),
            pl.BlockSpec((1, hidden), lambda i: (0, 0), memory_space=vmem),
            pl.BlockSpec((hidden, out_size), lambda i: (0, 0), memory_space=vmem),
            pl.BlockSpec((1, out_size), lambda i: (0, 0), memory_space=vmem),
        ],
        out_specs=pl.BlockSpec((tb, out_size), lambda i: (i, 0),
                               memory_space=vmem),
        compiler_params=pltpu.CompilerParams(
            dimension_semantics=_batch_axis_semantics(num_steps),
        ),
        cost_estimate=cost,
    )(x, w1, b1, w2, b2)
    return out


def reference_forward(x, w1, b1, w2, b2):
    h = jnp.maximum(x @ w1 + b1.reshape(1, -1), 0.0)
    return h @ w2 + b2.reshape(1, -1)


if __name__ == "__main__":
    # Shapes implied by Net(input_size, hidden_size, output_size)
    batch, input_size, hidden_size, output_size = 8, 16, 32, 4

    key = jax.random.PRNGKey(0)
    kx, kw1, kb1, kw2, kb2 = jax.random.split(key, 5)

    x = jax.random.normal(kx, (batch, input_size), dtype=jnp.float32)
    # Deterministic parameter init (scaled-normal stand-in for nn.Linear init).
    w1 = jax.random.normal(kw1, (input_size, hidden_size), jnp.float32) * (1.0 / input_size ** 0.5)
    b1 = jax.random.normal(kb1, (1, hidden_size), jnp.float32) * 0.01
    w2 = jax.random.normal(kw2, (hidden_size, output_size), jnp.float32) * (1.0 / hidden_size ** 0.5)
    b2 = jax.random.normal(kb2, (1, output_size), jnp.float32) * 0.01

    # Small-batch check (grid of 1 step).
    out = mlp_forward(x, w1, b1, w2, b2)
    jax.block_until_ready(out)
    ref = reference_forward(x, w1, b1, w2, b2)
    assert out.shape == (batch, output_size)
    # bf16 MXU inputs with f32 accumulation -> relaxed tolerance vs f32 reference.
    assert jnp.allclose(out, ref, atol=3e-2, rtol=3e-2), (
        float(jnp.max(jnp.abs(out - ref))))

    # Larger, non-tile-multiple batch to exercise the batch-tiled grid and the
    # ragged (masked) last block: 600 rows, tile 256 -> grid of 3 steps.
    big_b = 600
    xb = jax.random.normal(jax.random.PRNGKey(1), (big_b, input_size), jnp.float32)
    out_b = mlp_forward(xb, w1, b1, w2, b2, block_b=256)
    jax.block_until_ready(out_b)
    ref_b = reference_forward(xb, w1, b1, w2, b2)
    assert out_b.shape == (big_b, output_size)
    assert jnp.allclose(out_b, ref_b, atol=3e-2, rtol=3e-2), (
        float(jnp.max(jnp.abs(out_b - ref_b))))

    print("KERNEL_OK")
</pallas_src>

<mosaic_0001>
module attributes {stable_mosaic.version = 11 : i64} {
  func.func @_mlp_kernel(%arg0: i32, %arg1: memref<8x16xf32, #tpu.memory_space<vmem>>, %arg2: memref<16x32xf32, #tpu.memory_space<vmem>>, %arg3: memref<1x32xf32, #tpu.memory_space<vmem>>, %arg4: memref<32x4xf32, #tpu.memory_space<vmem>>, %arg5: memref<1x4xf32, #tpu.memory_space<vmem>>, %arg6: memref<8x4xf32, #tpu.memory_space<vmem>>) attributes {dimension_semantics = [#tpu.dimension_semantics<parallel>], iteration_bounds = array<i64: 1>, scalar_prefetch = 0 : i64, scratch_operands = 0 : i64, tpu.core_type = #tpu.core_type<tc>, window_params = [{transform_indices = @transform_0, window_bounds = array<i64: 8, 16>}, {pipeline_mode = #tpu.pipeline_mode<synchronous>, transform_indices = @transform_1, window_bounds = array<i64: 16, 32>}, {pipeline_mode = #tpu.pipeline_mode<synchronous>, transform_indices = @transform_2, window_bounds = array<i64: 1, 32>}, {pipeline_mode = #tpu.pipeline_mode<synchronous>, transform_indices = @transform_3, window_bounds = array<i64: 32, 4>}, {pipeline_mode = #tpu.pipeline_mode<synchronous>, transform_indices = @transform_4, window_bounds = array<i64: 1, 4>}, {transform_indices = @transform_5, window_bounds = array<i64: 8, 4>}]} {
    %c0 = arith.constant 0 : index
    %c0_0 = arith.constant 0 : index
    %0 = vector.load %arg1[%c0, %c0_0] : memref<8x16xf32, #tpu.memory_space<vmem>>, vector<8x16xf32>
    %1 = arith.truncf %0 : vector<8x16xf32> to vector<8x16xbf16>
    %c0_1 = arith.constant 0 : index
    %c0_2 = arith.constant 0 : index
    %2 = vector.load %arg2[%c0_1, %c0_2] : memref<16x32xf32, #tpu.memory_space<vmem>>, vector<16x32xf32>
    %3 = arith.truncf %2 : vector<16x32xf32> to vector<16x32xbf16>
    %cst = arith.constant dense<0.000000e+00> : vector<8x32xf32>
    %4 = tpu.matmul %1, %3, %cst {dimension_numbers = #tpu.dot_dimension_numbers<[1], [0], [0], [1], [0, 0, 1, 1], [], []>} : vector<8x16xbf16>, vector<16x32xbf16>, vector<8x32xf32> -> vector<8x32xf32>
    %c0_3 = arith.constant 0 : index
    %c0_4 = arith.constant 0 : index
    %5 = vector.load %arg3[%c0_3, %c0_4] : memref<1x32xf32, #tpu.memory_space<vmem>>, vector<1x32xf32>
    %6 = vector.broadcast %5 : vector<1x32xf32> to vector<8x32xf32>
    %7 = arith.addf %4, %6 : vector<8x32xf32>
    %cst_5 = arith.constant 0.000000e+00 : f32
    %8 = vector.broadcast %cst_5 : f32 to vector<8x32xf32>
    %9 = arith.maximumf %7, %8 : vector<8x32xf32>
    %c0_6 = arith.constant 0 : index
    %c0_7 = arith.constant 0 : index
    %10 = vector.load %arg4[%c0_6, %c0_7] : memref<32x4xf32, #tpu.memory_space<vmem>>, vector<32x4xf32>
    %11 = arith.truncf %10 : vector<32x4xf32> to vector<32x4xbf16>
    %12 = arith.truncf %9 : vector<8x32xf32> to vector<8x32xbf16>
    %cst_8 = arith.constant dense<0.000000e+00> : vector<8x4xf32>
    %13 = tpu.matmul %12, %11, %cst_8 {dimension_numbers = #tpu.dot_dimension_numbers<[1], [0], [0], [1], [0, 0, 1, 1], [], []>} : vector<8x32xbf16>, vector<32x4xbf16>, vector<8x4xf32> -> vector<8x4xf32>
    %c0_9 = arith.constant 0 : index
    %c0_10 = arith.constant 0 : index
    %14 = vector.load %arg5[%c0_9, %c0_10] : memref<1x4xf32, #tpu.memory_space<vmem>>, vector<1x4xf32>
    %15 = vector.broadcast %14 : vector<1x4xf32> to vector<8x4xf32>
    %16 = arith.addf %13, %15 : vector<8x4xf32>
    %c0_11 = arith.constant 0 : index
    %c0_12 = arith.constant 0 : index
    %17 = vector.load %arg6[%c0_11, %c0_12] : memref<8x4xf32, #tpu.memory_space<vmem>>, vector<8x4xf32>
    tpu.vector_store %arg6[%c0_11, %c0_12], %16 {strides = array<i32>} : memref<8x4xf32, #tpu.memory_space<vmem>>, vector<8x4xf32>,
    return
  }
  func.func @transform_0(%arg0: i32) -> (i32, i32) {
    %c0_i32 = arith.constant 0 : i32
    %c0_i32_0 = arith.constant 0 : i32
    return %arg0, %c0_i32 : i32, i32
  }
  func.func @transform_1(%arg0: i32) -> (i32, i32) {
    %c0_i32 = arith.constant 0 : i32
    %c0_i32_0 = arith.constant 0 : i32
    %c0_i32_1 = arith.constant 0 : i32
    return %c0_i32, %c0_i32_0 : i32, i32
  }
  func.func @transform_2(%arg0: i32) -> (i32, i32) {
    %c0_i32 = arith.constant 0 : i32
    %c0_i32_0 = arith.constant 0 : i32
    %c0_i32_1 = arith.constant 0 : i32
    return %c0_i32, %c0_i32_0 : i32, i32
  }
  func.func @transform_3(%arg0: i32) -> (i32, i32) {
    %c0_i32 = arith.constant 0 : i32
    %c0_i32_0 = arith.constant 0 : i32
    %c0_i32_1 = arith.constant 0 : i32
    return %c0_i32, %c0_i32_0 : i32, i32
  }
  func.func @transform_4(%arg0: i32) -> (i32, i32) {
    %c0_i32 = arith.constant 0 : i32
    %c0_i32_0 = arith.constant 0 : i32
    %c0_i32_1 = arith.constant 0 : i32
    return %c0_i32, %c0_i32_0 : i32, i32
  }
  func.func @transform_5(%arg0: i32) -> (i32, i32) {
    %c0_i32 = arith.constant 0 : i32
    %c0_i32_0 = arith.constant 0 : i32
    return %arg0, %c0_i32 : i32, i32
  }
}

</mosaic_0001>

<llo_original>
// kernel: mlp_forward.1
$region0: #{mlp_forward.1}
  #allocation0 [shape = 'u32[]', space=smem, size = 0x4, offset = 0x4, fixed_abs, tag = 'smem constant byte address 0x4 - core index']
  #allocation1 [shape = 'u32[144,128]{1,0:T(1,128)}', space=vmem, size = 0x12000, scoped, tag = 'internal scratch']
  %s0 = inlined_call_operand.vmem [shape: f32[8,16], index: 0, kind: input, shape index: {}]
  %s1 = inlined_call_operand.vmem [shape: f32[16,32], index: 1, kind: input, shape index: {}]
  %s2 = inlined_call_operand.vmem [shape: f32[1,32], index: 2, kind: input, shape index: {}]
  %s3 = inlined_call_operand.vmem [shape: f32[32,4], index: 3, kind: input, shape index: {}]
  %s4 = inlined_call_operand.vmem [shape: f32[1,4], index: 4, kind: input, shape index: {}]
  %s5 = inlined_call_operand.vmem [shape: f32[8,4], index: 5, kind: output, shape index: {}]
  %s6 = sld [smem:[#allocation0]]
  $region30: #{mlp_forward.1} parent=0
    _
  %s8 = ssub.s32 1, %s6
  %s9 = scalar_select 0, %s8, %s6
  // Predicated region
  $region2: #{mlp_forward.1} parent=0 // pred_check
    _
  $region3: #{mlp_forward.1} parent=0 // pred_check_branch
    %11 = sbr.rel (0) target = $region5
  $region4: #{mlp_forward.1} parent=0 // pred_region
    _
  $region5: #{mlp_forward.1} parent=0 // pred_fallthru
    _
  // Predicated region
  $region6: #{mlp_forward.1} parent=0 // pred_check
    _
  $region7: #{mlp_forward.1} parent=0 // pred_check_branch
    %13 = sbr.rel (0) target = $region9
  $region8: #{mlp_forward.1} parent=0 // pred_region
    _
  $region9: #{mlp_forward.1} parent=0 // pred_fallthru
    _
  // Predicated region
  $region10: #{mlp_forward.1} parent=0 // pred_check
    _
  $region11: #{mlp_forward.1} parent=0 // pred_check_branch
    %15 = sbr.rel (0) target = $region13
  $region12: #{mlp_forward.1} parent=0 // pred_region
    _
  $region13: #{mlp_forward.1} parent=0 // pred_fallthru
    _
  // Predicated region
  $region14: #{mlp_forward.1} parent=0 // pred_check
    _
  $region15: #{mlp_forward.1} parent=0 // pred_check_branch
    %17 = sbr.rel (0) target = $region17
  $region16: #{mlp_forward.1} parent=0 // pred_region
    _
  $region17: #{mlp_forward.1} parent=0 // pred_fallthru
    _
  // Predicated region
  $region18: #{mlp_forward.1} parent=0 // pred_check
    _
  $region19: #{mlp_forward.1} parent=0 // pred_check_branch
    %19 = sbr.rel (0) target = $region21
  $region20: #{mlp_forward.1} parent=0 // pred_region
    _
  $region21: #{mlp_forward.1} parent=0 // pred_fallthru
    _
  %v21 = vld [vmem:[%s0] sm:$0xff]
  %v22 = vpack.c.bf16 %v21, %v21
  %v23 = vld [vmem:[%s1] sm:$0xff]
  %v24 = vld [vmem:[%s1 + $0x8] sm:$0xff]
  %v25 = vpack.c.bf16 %v24, %v23
  %v26 = vld [vmem:[%s2] sm:$0x1]
  %v28 = vlaneseq
  %v29 = vshrl.u32 %v28, 7
  %v30 = vsub.s32 0, %v29
  %v31 = vrot.slane %v26, %v30
  %vm33 = vcmask 130048
  %v35 = vsel %vm33, %v22, 0
  %37 = vmatprep.subr.bf16.mxu0 0
  %38 = vmatpush1.bf16.msra.mxu0 %v25
  %39 = vmatprep.subr.bf16.mxu0 0
  %40 = vmatpush1.bf16.msra.mxu0 0
  %41 = vmatprep.subr.bf16.mxu0 0
  %42 = vmatpush1.bf16.msra.mxu0 0
  %43 = vmatprep.subr.bf16.mxu0 0
  %44 = vmatpush1.bf16.msra.mxu0 0
  %45 = vmatprep.subr.bf16.mxu0 0
  %46 = vmatpush1.bf16.msra.mxu0 0
  %47 = vmatprep.subr.bf16.mxu0 0
  %48 = vmatpush1.bf16.msra.mxu0 0
  %49 = vmatprep.subr.bf16.mxu0 0
  %50 = vmatpush1.bf16.msra.mxu0 0
  %51 = vmatprep.subr.bf16.mxu0 0
  %52 = vmatpush1.bf16.msra.mxu0 0
  %53 = vmatprep.subr.bf16.mxu0 0
  %54 = vmatpush1.bf16.msra.mxu0 0
  %55 = vmatprep.subr.bf16.mxu0 0
  %56 = vmatpush1.bf16.msra.mxu0 0
  %57 = vmatprep.subr.bf16.mxu0 0
  %58 = vmatpush1.bf16.msra.mxu0 0
  %59 = vmatprep.subr.bf16.mxu0 0
  %60 = vmatpush1.bf16.msra.mxu0 0
  %61 = vmatprep.subr.bf16.mxu0 0
  %62 = vmatpush1.bf16.msra.mxu0 0
  %63 = vmatprep.subr.bf16.mxu0 0
  %64 = vmatpush1.bf16.msra.mxu0 0
  %65 = vmatprep.subr.bf16.mxu0 0
  %66 = vmatpush1.bf16.msra.mxu0 0
  %67 = vmatprep.subr.bf16.mxu0 0
  %68 = vmatpush1.bf16.msra.mxu0 0
  %69 = vmatprep.mubr.bf16.mxu0 0
  %70 = vmatmul.mubr.bf16.gmra.mrb[0].mxu0 %v35
  %v71 = vpop.f32.mrb[0].mxu0
  %v72 = vadd.f32 %v31, %v71
  %v73 = vpop.f32.mrb[0].mxu0
  %v74 = vpop.f32.mrb[0].mxu0
  %v75 = vpop.f32.mrb[0].mxu0
  %76 = vdwg.mxu0
  %v77 = vmax.f32 %v72, 0.0
  %v78 = vld [vmem:[%s3] sm:$0xff]
  %v79 = vld [vmem:[%s3 + $0x8] sm:$0xff]
  %v80 = vld [vmem:[%s3 + $0x10] sm:$0xff]
  %v81 = vld [vmem:[%s3 + $0x18] sm:$0xff]
  %v82 = vpack.c.bf16 %v79, %v78
  %v83 = vpack.c.bf16 %v81, %v80
  %v84 = vpack.c.bf16 %v77, %v77
  %v85 = vld [vmem:[%s4] sm:$0x1]
  %v87 = vlaneseq
  %v88 = vshrl.u32 %v87, 7
  %v89 = vsub.s32 0, %v88
  %v90 = vrot.slane %v85, %v89
  %vm92 = vcmask 261120
  %v94 = vsel %vm92, %v84, 0
  %96 = vmatprep.subr.bf16.mxu0 0
  %97 = vmatpush1.bf16.msra.mxu0 %v82
  %98 = vmatprep.subr.bf16.mxu0 0
  %99 = vmatpush1.bf16.msra.mxu0 %v83
  %100 = vmatprep.subr.bf16.mxu0 0
  %101 = vmatpush1.bf16.msra.mxu0 0
  %102 = vmatprep.subr.bf16.mxu0 0
  %103 = vmatpush1.bf16.msra.mxu0 0
  %104 = vmatprep.subr.bf16.mxu0 0
  %105 = vmatpush1.bf16.msra.mxu0 0
  %106 = vmatprep.subr.bf16.mxu0 0
  %107 = vmatpush1.bf16.msra.mxu0 0
  %108 = vmatprep.subr.bf16.mxu0 0
  %109 = vmatpush1.bf16.msra.mxu0 0
  %110 = vmatprep.subr.bf16.mxu0 0
  %111 = vmatpush1.bf16.msra.mxu0 0
  %112 = vmatprep.subr.bf16.mxu0 0
  %113 = vmatpush1.bf16.msra.mxu0 0
  %114 = vmatprep.subr.bf16.mxu0 0
  %115 = vmatpush1.bf16.msra.mxu0 0
  %116 = vmatprep.subr.bf16.mxu0 0
  %117 = vmatpush1.bf16.msra.mxu0 0
  %118 = vmatprep.subr.bf16.mxu0 0
  %119 = vmatpush1.bf16.msra.mxu0 0
  %120 = vmatprep.subr.bf16.mxu0 0
  %121 = vmatpush1.bf16.msra.mxu0 0
  %122 = vmatprep.subr.bf16.mxu0 0
  %123 = vmatpush1.bf16.msra.mxu0 0
  %124 = vmatprep.subr.bf16.mxu0 0
  %125 = vmatpush1.bf16.msra.mxu0 0
  %126 = vmatprep.subr.bf16.mxu0 0
  %127 = vmatpush1.bf16.msra.mxu0 0
  %128 = vmatprep.mubr.bf16.mxu0 0
  %129 = vmatmul.mubr.bf16.gmra.mrb[0].mxu0 %v94
  %v130 = vpop.f32.mrb[0].mxu0
  %v131 = vadd.f32 %v90, %v130
  %v132 = vpop.f32.mrb[0].mxu0
  %v133 = vpop.f32.mrb[0].mxu0
  %v134 = vpop.f32.mrb[0].mxu0
  %135 = vdwg.mxu0
  %vm136 = vcmask 31744
  %137 = vst.msk [vmem:[%s5] sm:$0xff] %vm136, %v131
  // Predicated region
  $region22: #{mlp_forward.1} parent=0 // pred_check
    _
  $region23: #{mlp_forward.1} parent=0 // pred_check_branch
    %139 = sbr.rel (0) target = $region25
  $region24: #{mlp_forward.1} parent=0 // pred_region
    _
  $region25: #{mlp_forward.1} parent=0 // pred_fallthru
    _
  // Predicated region
  $region26: #{mlp_forward.1} parent=0 // pred_check
    _
  $region27: #{mlp_forward.1} parent=0 // pred_check_branch
    %141 = sbr.rel (0) target = $region29
  $region28: #{mlp_forward.1} parent=0 // pred_region
    _
  $region29: #{mlp_forward.1} parent=0 // pred_fallthru
    _

</llo_original>
